<compile_context>
chip_gen: v6e
topology: v6e:2x2x1
jax: 0.10.0
libtpu: 0.0.40
codegen_flags: <defaults>
</compile_context>

<pallas_src>
import functools

import jax
import jax.numpy as jnp
from jax.experimental import pallas as pl
from jax.experimental.pallas import tpu as pltpu


def bottleneck_kernel(x_ref, masks_ref,
                      w1_ref, s1_ref, b1_ref,
                      w2_ref, s2_ref, b2_ref,
                      w3_ref, s3_ref, b3_ref,
                      o_ref, im2col_ref, *, H, W):
    """Fused bottleneck for one image.

    x_ref     : (Cin, H*W) bf16   (batch dim squeezed by the BlockSpec)
    masks_ref : (9, H*W)  bf16    {0,1} validity of each 3x3 tap (host built)
    w*_ref    : bf16 conv weights (1x1 / flattened-3x3-im2col / 1x1)
    s*_ref    : (C, 1) f32 BN scale ; b*_ref : (C, 1) f32 BN shift
    o_ref     : (Cin, H*W) f32
    im2col_ref: (9*P, H*W) bf16 VMEM scratch
    """
    HW = H * W
    P = w1_ref.shape[0]

    # ---- conv1 (1x1) + BN (f32 scale/shift epilogue) + relu -----------------
    t1 = jnp.dot(w1_ref[...], x_ref[...], preferred_element_type=jnp.float32)
    t1 = jnp.maximum(t1 * s1_ref[...] + b1_ref[...], 0.0)        # (P, HW) f32
    t1_bf = t1.astype(jnp.bfloat16)

    # ---- conv2 (3x3, stride 1, pad 1) as ONE im2col matmul ------------------
    # The nine spatial taps are lane rolls of t1; the host-precomputed masks
    # zero lanes that would wrap across row / image boundaries.  Each masked
    # tap is written directly into the bf16 VMEM scratch (no concat copy).
    # TODO(synk): roll t1_bf (bf16) directly once packed-dtype lane rotation is
    #             guaranteed on all target generations (halves XLU traffic);
    #             rolls stay f32 here for portability (v5e has no bf16 VPU).
    t = 0
    for dh in (-1, 0, 1):
        for dw in (-1, 0, 1):
            s = dh * W + dw
            if s == 0:
                im2col_ref[t * P:(t + 1) * P, :] = t1_bf
            else:
                # lane p of the rolled tensor holds t1[:, p + s]
                rolled = pltpu.roll(t1, shift=(-s) % HW, axis=1)
                im2col_ref[t * P:(t + 1) * P, :] = (
                    rolled.astype(jnp.bfloat16) * masks_ref[t:t + 1, :])
            t += 1
    t2 = jnp.dot(w2_ref[...], im2col_ref[...],
                 preferred_element_type=jnp.float32)              # (P, HW) f32
    t2 = jnp.maximum(t2 * s2_ref[...] + b2_ref[...], 0.0)

    # ---- conv3 (1x1) + BN + identity residual + relu ------------------------
    t3 = jnp.dot(w3_ref[...], t2.astype(jnp.bfloat16),
                 preferred_element_type=jnp.float32)              # (Cin, HW) f32
    res = x_ref[...].astype(jnp.float32)   # re-read x only here (short live range)
    o_ref[...] = jnp.maximum(t3 * s3_ref[...] + b3_ref[...] + res, 0.0)


def make_conv2_masks(H, W, dtype=jnp.bfloat16):
    """(9, H*W) {0,1} validity of each 3x3 tap under 'same' (pad=1) padding.

    Row t = (dh+1)*3 + (dw+1) is 1 where pixel (h+dh, w+dw) lies inside the
    image.  Grid-invariant, so it is built once on the host instead of
    re-deriving it with iota / div / mod inside every kernel step.
    """
    pos = jnp.arange(H * W)
    hh = pos // W
    ww = pos % W
    rows = []
    for dh in (-1, 0, 1):
        for dw in (-1, 0, 1):
            valid = ((hh + dh >= 0) & (hh + dh < H) &
                     (ww + dw >= 0) & (ww + dw < W))
            rows.append(valid)
    return jnp.stack(rows, axis=0).astype(dtype)


def _vmem_limit_bytes(Cin, P, HW):
    bf16, f32 = 2, 4
    resident = ((Cin * P + 9 * P * P + P * Cin) * bf16   # conv weights
                + 9 * HW * bf16                           # tap validity masks
                + 6 * 4 * P * f32)                        # BN scales / shifts
    per_step = (2 * Cin * HW * bf16      # double-buffered x block (bf16)
                + 2 * Cin * HW * f32     # double-buffered out block (f32)
                + 9 * P * HW * bf16      # im2col VMEM scratch
                + 4 * P * HW * f32       # t1 / t2 / rolled tap in flight
                + 2 * Cin * HW * f32)    # conv3 accumulator + residual
    est = 2 * (resident + per_step)      # headroom for compiler temporaries
    # Raise above the 16 MiB (v5e) / 32 MiB (v6e, v7x) scoped defaults when
    # needed, but stay under v7x's 64 MiB physical VMEM.
    return int(min(max(est, 32 * 1024 * 1024), 60 * 1024 * 1024))


def bottleneck_pallas(x_nchw, params):
    """x_nchw: (N, Cin, H, W) f32 with Cin == 4*planes. Returns (N, Cin, H, W) f32."""
    (w1, s1, b1, w2, s2, b2, w3, s3, b3, masks) = params
    N, Cin, H, W = x_nchw.shape
    P = w1.shape[0]
    if Cin != 4 * P:
        # Guard: only the identity-residual bottleneck (stride=(1,1),
        # downsample=None, eval-mode BN) is implemented.
        raise ValueError("identity residual requires inplanes == 4*planes")
    HW = H * W

    # Lane-dense layout (C, H*W): contiguous reshape only, no transpose.
    # bf16 input halves HBM read bytes for this HBM-bound block.
    x_flat = x_nchw.reshape(N, Cin, HW).astype(jnp.bfloat16)

    kernel = functools.partial(bottleneck_kernel, H=H, W=W)
    const = lambda n: (0, 0)   # resident operands: weights / masks / BN params

    out_flat = pl.pallas_call(
        kernel,
        out_shape=jax.ShapeDtypeStruct((N, Cin, HW), jnp.float32),
        grid_spec=pltpu.PrefetchScalarGridSpec(
            num_scalar_prefetch=0,
            grid=(N,),
            in_specs=[
                pl.BlockSpec((None, Cin, HW), lambda n: (n, 0, 0)),   # x (bf16)
                pl.BlockSpec(masks.shape, const),                     # 3x3 tap masks
                pl.BlockSpec(w1.shape, const), pl.BlockSpec(s1.shape, const),
                pl.BlockSpec(b1.shape, const),
                pl.BlockSpec(w2.shape, const), pl.BlockSpec(s2.shape, const),
                pl.BlockSpec(b2.shape, const),
                pl.BlockSpec(w3.shape, const), pl.BlockSpec(s3.shape, const),
                pl.BlockSpec(b3.shape, const),
            ],
            out_specs=pl.BlockSpec((None, Cin, HW), lambda n: (n, 0, 0)),
            scratch_shapes=[pltpu.VMEM((9 * P, HW), jnp.bfloat16)],   # im2col
        ),
        compiler_params=pltpu.CompilerParams(
            dimension_semantics=("parallel",),            # batch split across TCs
            vmem_limit_bytes=_vmem_limit_bytes(Cin, P, HW)),
    )(x_flat, masks, w1, s1, b1, w2, s2, b2, w3, s3, b3)
    # TODO(synk): for production feature maps (e.g. 56x56x256) and small N, add
    #             a second "parallel" grid axis over H row strips with a 1-row
    #             halo (recompute conv1 on strip+2 rows) so each TensorCore
    #             gets >=4 pipeline steps and v7x's 64 MiB VMEM is respected.
    # TODO(synk): for deep stages with H*W < 128 lanes, pack several images
    #             along the lane axis per grid step to keep stores unmasked.
    return out_flat.reshape(N, Cin, H, W)


def make_params(key, inplanes, planes, H, W, eps=1e-5):
    expansion = 4
    assert inplanes == planes * expansion
    ks = jax.random.split(key, 15)

    # Conv weights in PyTorch OIHW form (source of truth for the reference).
    w1_oihw = 0.1 * jax.random.normal(ks[0], (planes, inplanes, 1, 1), jnp.float32)
    w2_oihw = 0.1 * jax.random.normal(ks[1], (planes, planes, 3, 3), jnp.float32)
    w3_oihw = 0.1 * jax.random.normal(ks[2], (planes * expansion, planes, 1, 1),
                                      jnp.float32)

    def bn_params(kg, kb, km, kv, c):
        gamma = jax.random.uniform(kg, (c,), jnp.float32, 0.5, 1.5)
        beta = 0.1 * jax.random.normal(kb, (c,), jnp.float32)
        mean = 0.1 * jax.random.normal(km, (c,), jnp.float32)
        var = jax.random.uniform(kv, (c,), jnp.float32, 0.5, 1.5)
        return gamma, beta, mean, var

    bn1 = bn_params(ks[3], ks[4], ks[5], ks[6], planes)
    bn2 = bn_params(ks[7], ks[8], ks[9], ks[10], planes)
    bn3 = bn_params(ks[11], ks[12], ks[13], ks[14], planes * expansion)

    def fold(gamma, beta, mean, var):
        scale = gamma / jnp.sqrt(var + eps)
        shift = beta - mean * scale
        # Scale stays an f32 epilogue (NOT folded into bf16 weights) so
        # small-running-variance channels don't amplify bf16 rounding.
        return scale[:, None], shift[:, None]

    s1, b1 = fold(*bn1)
    s2, b2 = fold(*bn2)
    s3, b3 = fold(*bn3)

    # bf16 conv weights for the MXU fast path.
    w1f = w1_oihw[:, :, 0, 0].astype(jnp.bfloat16)                       # (P, Cin)
    w2f = jnp.concatenate(
        [w2_oihw[:, :, kh, kw] for kh in range(3) for kw in range(3)],
        axis=1).astype(jnp.bfloat16)                                     # (P, 9P)
    w3f = w3_oihw[:, :, 0, 0].astype(jnp.bfloat16)                       # (4P, P)

    masks = make_conv2_masks(H, W)                                       # (9, HW) bf16

    kernel_params = (w1f, s1, b1, w2f, s2, b2, w3f, s3, b3, masks)
    torch_params = (w1_oihw, w2_oihw, w3_oihw, bn1, bn2, bn3, eps)
    return kernel_params, torch_params


def reference_nchw(x, torch_params):
    """Pure-JAX f32 reference matching the PyTorch (eval-mode) forward in NCHW."""
    w1, w2, w3, bn1, bn2, bn3, eps = torch_params

    def conv(x, w, pad):
        return jax.lax.conv_general_dilated(
            x, w, window_strides=(1, 1),
            padding=[(pad, pad), (pad, pad)],
            dimension_numbers=("NCHW", "OIHW", "NCHW"))

    def bn(x, p):
        gamma, beta, mean, var = p
        return ((x - mean[None, :, None, None])
                / jnp.sqrt(var[None, :, None, None] + eps)
                * gamma[None, :, None, None] + beta[None, :, None, None])

    out = jax.nn.relu(bn(conv(x, w1, 0), bn1))
    out = jax.nn.relu(bn(conv(out, w2, 1), bn2))
    out = bn(conv(out, w3, 0), bn3)
    return jax.nn.relu(out + x)


if __name__ == "__main__":
    # Small test shapes.  planes=8 keeps the 9 scratch-row writes sublane (8)
    # aligned; inplanes = planes * expansion so the identity residual path
    # (stride=(1,1), downsample=None) is valid.
    N, planes = 2, 8
    inplanes = planes * 4            # 32
    H = W = 16

    key = jax.random.PRNGKey(0)
    kx, kp = jax.random.split(key)
    x = jax.random.normal(kx, (N, inplanes, H, W), jnp.float32)

    kernel_params, torch_params = make_params(kp, inplanes, planes, H, W)

    out = jax.block_until_ready(bottleneck_pallas(x, kernel_params))
    ref = reference_nchw(x, torch_params)

    # bf16 activations/weights on the MXU (f32 accumulation) vs a pure-f32
    # reference: tolerance loosened accordingly.
    if not jnp.allclose(out, ref, atol=7.5e-2, rtol=5e-2):
        raise AssertionError(
            f"mismatch: max abs err = {jnp.max(jnp.abs(out - ref))}")

    print("KERNEL_OK")
</pallas_src>

<mosaic_0001>
module attributes {stable_mosaic.version = 11 : i64} {
  func.func @bottleneck_kernel(%arg0: i32, %arg1: memref<1x32x256xbf16, #tpu.memory_space<vmem>>, %arg2: memref<9x256xbf16, #tpu.memory_space<vmem>>, %arg3: memref<8x32xbf16, #tpu.memory_space<vmem>>, %arg4: memref<8x1xf32, #tpu.memory_space<vmem>>, %arg5: memref<8x1xf32, #tpu.memory_space<vmem>>, %arg6: memref<8x72xbf16, #tpu.memory_space<vmem>>, %arg7: memref<8x1xf32, #tpu.memory_space<vmem>>, %arg8: memref<8x1xf32, #tpu.memory_space<vmem>>, %arg9: memref<32x8xbf16, #tpu.memory_space<vmem>>, %arg10: memref<32x1xf32, #tpu.memory_space<vmem>>, %arg11: memref<32x1xf32, #tpu.memory_space<vmem>>, %arg12: memref<1x32x256xf32, #tpu.memory_space<vmem>>, %arg13: memref<72x256xbf16, #tpu.memory_space<vmem>>) attributes {dimension_semantics = [#tpu.dimension_semantics<parallel>], iteration_bounds = array<i64: 2>, scalar_prefetch = 0 : i64, scratch_operands = 1 : i64, tpu.core_type = #tpu.core_type<tc>, window_params = [{transform_indices = @transform_0, window_bounds = array<i64: 1, 32, 256>}, {pipeline_mode = #tpu.pipeline_mode<synchronous>, transform_indices = @transform_1, window_bounds = array<i64: 9, 256>}, {pipeline_mode = #tpu.pipeline_mode<synchronous>, transform_indices = @transform_2, window_bounds = array<i64: 8, 32>}, {pipeline_mode = #tpu.pipeline_mode<synchronous>, transform_indices = @transform_3, window_bounds = array<i64: 8, 1>}, {pipeline_mode = #tpu.pipeline_mode<synchronous>, transform_indices = @transform_4, window_bounds = array<i64: 8, 1>}, {pipeline_mode = #tpu.pipeline_mode<synchronous>, transform_indices = @transform_5, window_bounds = array<i64: 8, 72>}, {pipeline_mode = #tpu.pipeline_mode<synchronous>, transform_indices = @transform_6, window_bounds = array<i64: 8, 1>}, {pipeline_mode = #tpu.pipeline_mode<synchronous>, transform_indices = @transform_7, window_bounds = array<i64: 8, 1>}, {pipeline_mode = #tpu.pipeline_mode<synchronous>, transform_indices = @transform_8, window_bounds = array<i64: 32, 8>}, {pipeline_mode = #tpu.pipeline_mode<synchronous>, transform_indices = @transform_9, window_bounds = array<i64: 32, 1>}, {pipeline_mode = #tpu.pipeline_mode<synchronous>, transform_indices = @transform_10, window_bounds = array<i64: 32, 1>}, {transform_indices = @transform_11, window_bounds = array<i64: 1, 32, 256>}]} {
    %c0 = arith.constant 0 : index
    %c0_0 = arith.constant 0 : index
    %0 = vector.load %arg3[%c0, %c0_0] : memref<8x32xbf16, #tpu.memory_space<vmem>>, vector<8x32xbf16>
    %c0_1 = arith.constant 0 : index
    %c0_2 = arith.constant 0 : index
    %c0_3 = arith.constant 0 : index
    %1 = vector.load %arg1[%c0_1, %c0_2, %c0_3] : memref<1x32x256xbf16, #tpu.memory_space<vmem>>, vector<1x32x256xbf16>
    %2 = vector.shape_cast %1 : vector<1x32x256xbf16> to vector<32x256xbf16>
    %cst = arith.constant dense<0.000000e+00> : vector<8x256xf32>
    %3 = tpu.matmul %0, %2, %cst {dimension_numbers = #tpu.dot_dimension_numbers<[1], [0], [0], [1], [0, 0, 1, 1], [], []>} : vector<8x32xbf16>, vector<32x256xbf16>, vector<8x256xf32> -> vector<8x256xf32>
    %c0_4 = arith.constant 0 : index
    %c0_5 = arith.constant 0 : index
    %4 = vector.load %arg4[%c0_4, %c0_5] : memref<8x1xf32, #tpu.memory_space<vmem>>, vector<8x1xf32>
    %5 = vector.broadcast %4 : vector<8x1xf32> to vector<8x256xf32>
    %6 = arith.mulf %3, %5 : vector<8x256xf32>
    %c0_6 = arith.constant 0 : index
    %c0_7 = arith.constant 0 : index
    %7 = vector.load %arg5[%c0_6, %c0_7] : memref<8x1xf32, #tpu.memory_space<vmem>>, vector<8x1xf32>
    %8 = vector.broadcast %7 : vector<8x1xf32> to vector<8x256xf32>
    %9 = arith.addf %6, %8 : vector<8x256xf32>
    %cst_8 = arith.constant 0.000000e+00 : f32
    %10 = vector.broadcast %cst_8 : f32 to vector<8x256xf32>
    %11 = arith.maximumf %9, %10 : vector<8x256xf32>
    %12 = arith.truncf %11 : vector<8x256xf32> to vector<8x256xbf16>
    %c17_i32 = arith.constant 17 : i32
    %13 = tpu.dynamic_rotate %11 by %c17_i32 dim 1 : vector<8x256xf32>, i32 -> vector<8x256xf32>
    %14 = arith.truncf %13 : vector<8x256xf32> to vector<8x256xbf16>
    %c0_9 = arith.constant 0 : index
    %c0_10 = arith.constant 0 : index
    %15 = vector.load %arg2[%c0_9, %c0_10] : memref<9x256xbf16, #tpu.memory_space<vmem>>, vector<1x256xbf16>
    %16 = vector.broadcast %15 : vector<1x256xbf16> to vector<8x256xbf16>
    %17 = arith.mulf %14, %16 : vector<8x256xbf16>
    %c0_11 = arith.constant 0 : index
    %c0_12 = arith.constant 0 : index
    %18 = vector.load %arg13[%c0_11, %c0_12] : memref<72x256xbf16, #tpu.memory_space<vmem>>, vector<8x256xbf16>
    tpu.vector_store %arg13[%c0_11, %c0_12], %17 {strides = array<i32>} : memref<72x256xbf16, #tpu.memory_space<vmem>>, vector<8x256xbf16>,
    %c16_i32 = arith.constant 16 : i32
    %19 = tpu.dynamic_rotate %11 by %c16_i32 dim 1 : vector<8x256xf32>, i32 -> vector<8x256xf32>
    %20 = arith.truncf %19 : vector<8x256xf32> to vector<8x256xbf16>
    %c1 = arith.constant 1 : index
    %c0_13 = arith.constant 0 : index
    %21 = vector.load %arg2[%c1, %c0_13] : memref<9x256xbf16, #tpu.memory_space<vmem>>, vector<1x256xbf16>
    %22 = vector.broadcast %21 : vector<1x256xbf16> to vector<8x256xbf16>
    %23 = arith.mulf %20, %22 : vector<8x256xbf16>
    %c8 = arith.constant 8 : index
    %c0_14 = arith.constant 0 : index
    %24 = vector.load %arg13[%c8, %c0_14] : memref<72x256xbf16, #tpu.memory_space<vmem>>, vector<8x256xbf16>
    tpu.vector_store %arg13[%c8, %c0_14], %23 {strides = array<i32>} : memref<72x256xbf16, #tpu.memory_space<vmem>>, vector<8x256xbf16>,
    %c15_i32 = arith.constant 15 : i32
    %25 = tpu.dynamic_rotate %11 by %c15_i32 dim 1 : vector<8x256xf32>, i32 -> vector<8x256xf32>
    %26 = arith.truncf %25 : vector<8x256xf32> to vector<8x256xbf16>
    %c2 = arith.constant 2 : index
    %c0_15 = arith.constant 0 : index
    %27 = vector.load %arg2[%c2, %c0_15] : memref<9x256xbf16, #tpu.memory_space<vmem>>, vector<1x256xbf16>
    %28 = vector.broadcast %27 : vector<1x256xbf16> to vector<8x256xbf16>
    %29 = arith.mulf %26, %28 : vector<8x256xbf16>
    %c16 = arith.constant 16 : index
    %c0_16 = arith.constant 0 : index
    %30 = vector.load %arg13[%c16, %c0_16] : memref<72x256xbf16, #tpu.memory_space<vmem>>, vector<8x256xbf16>
    tpu.vector_store %arg13[%c16, %c0_16], %29 {strides = array<i32>} : memref<72x256xbf16, #tpu.memory_space<vmem>>, vector<8x256xbf16>,
    %c1_i32 = arith.constant 1 : i32
    %31 = tpu.dynamic_rotate %11 by %c1_i32 dim 1 : vector<8x256xf32>, i32 -> vector<8x256xf32>
    %32 = arith.truncf %31 : vector<8x256xf32> to vector<8x256xbf16>
    %c3 = arith.constant 3 : index
    %c0_17 = arith.constant 0 : index
    %33 = vector.load %arg2[%c3, %c0_17] : memref<9x256xbf16, #tpu.memory_space<vmem>>, vector<1x256xbf16>
    %34 = vector.broadcast %33 : vector<1x256xbf16> to vector<8x256xbf16>
    %35 = arith.mulf %32, %34 : vector<8x256xbf16>
    %c24 = arith.constant 24 : index
    %c0_18 = arith.constant 0 : index
    %36 = vector.load %arg13[%c24, %c0_18] : memref<72x256xbf16, #tpu.memory_space<vmem>>, vector<8x256xbf16>
    tpu.vector_store %arg13[%c24, %c0_18], %35 {strides = array<i32>} : memref<72x256xbf16, #tpu.memory_space<vmem>>, vector<8x256xbf16>,
    %c32 = arith.constant 32 : index
    %c0_19 = arith.constant 0 : index
    %37 = vector.load %arg13[%c32, %c0_19] : memref<72x256xbf16, #tpu.memory_space<vmem>>, vector<8x256xbf16>
    tpu.vector_store %arg13[%c32, %c0_19], %12 {strides = array<i32>} : memref<72x256xbf16, #tpu.memory_space<vmem>>, vector<8x256xbf16>,
    %c255_i32 = arith.constant 255 : i32
    %38 = tpu.dynamic_rotate %11 by %c255_i32 dim 1 : vector<8x256xf32>, i32 -> vector<8x256xf32>
    %39 = arith.truncf %38 : vector<8x256xf32> to vector<8x256xbf16>
    %c5 = arith.constant 5 : index
    %c0_20 = arith.constant 0 : index
    %40 = vector.load %arg2[%c5, %c0_20] : memref<9x256xbf16, #tpu.memory_space<vmem>>, vector<1x256xbf16>
    %41 = vector.broadcast %40 : vector<1x256xbf16> to vector<8x256xbf16>
    %42 = arith.mulf %39, %41 : vector<8x256xbf16>
    %c40 = arith.constant 40 : index
    %c0_21 = arith.constant 0 : index
    %43 = vector.load %arg13[%c40, %c0_21] : memref<72x256xbf16, #tpu.memory_space<vmem>>, vector<8x256xbf16>
    tpu.vector_store %arg13[%c40, %c0_21], %42 {strides = array<i32>} : memref<72x256xbf16, #tpu.memory_space<vmem>>, vector<8x256xbf16>,
    %c241_i32 = arith.constant 241 : i32
    %44 = tpu.dynamic_rotate %11 by %c241_i32 dim 1 : vector<8x256xf32>, i32 -> vector<8x256xf32>
    %45 = arith.truncf %44 : vector<8x256xf32> to vector<8x256xbf16>
    %c6 = arith.constant 6 : index
    %c0_22 = arith.constant 0 : index
    %46 = vector.load %arg2[%c6, %c0_22] : memref<9x256xbf16, #tpu.memory_space<vmem>>, vector<1x256xbf16>
    %47 = vector.broadcast %46 : vector<1x256xbf16> to vector<8x256xbf16>
    %48 = arith.mulf %45, %47 : vector<8x256xbf16>
    %c48 = arith.constant 48 : index
    %c0_23 = arith.constant 0 : index
    %49 = vector.load %arg13[%c48, %c0_23] : memref<72x256xbf16, #tpu.memory_space<vmem>>, vector<8x256xbf16>
    tpu.vector_store %arg13[%c48, %c0_23], %48 {strides = array<i32>} : memref<72x256xbf16, #tpu.memory_space<vmem>>, vector<8x256xbf16>,
    %c240_i32 = arith.constant 240 : i32
    %50 = tpu.dynamic_rotate %11 by %c240_i32 dim 1 : vector<8x256xf32>, i32 -> vector<8x256xf32>
    %51 = arith.truncf %50 : vector<8x256xf32> to vector<8x256xbf16>
    %c7 = arith.constant 7 : index
    %c0_24 = arith.constant 0 : index
    %52 = vector.load %arg2[%c7, %c0_24] : memref<9x256xbf16, #tpu.memory_space<vmem>>, vector<1x256xbf16>
    %53 = vector.broadcast %52 : vector<1x256xbf16> to vector<8x256xbf16>
    %54 = arith.mulf %51, %53 : vector<8x256xbf16>
    %c56 = arith.constant 56 : index
    %c0_25 = arith.constant 0 : index
    %55 = vector.load %arg13[%c56, %c0_25] : memref<72x256xbf16, #tpu.memory_space<vmem>>, vector<8x256xbf16>
    tpu.vector_store %arg13[%c56, %c0_25], %54 {strides = array<i32>} : memref<72x256xbf16, #tpu.memory_space<vmem>>, vector<8x256xbf16>,
    %c239_i32 = arith.constant 239 : i32
    %56 = tpu.dynamic_rotate %11 by %c239_i32 dim 1 : vector<8x256xf32>, i32 -> vector<8x256xf32>
    %57 = arith.truncf %56 : vector<8x256xf32> to vector<8x256xbf16>
    %c8_26 = arith.constant 8 : index
    %c0_27 = arith.constant 0 : index
    %58 = vector.load %arg2[%c8_26, %c0_27] : memref<9x256xbf16, #tpu.memory_space<vmem>>, vector<1x256xbf16>
    %59 = vector.broadcast %58 : vector<1x256xbf16> to vector<8x256xbf16>
    %60 = arith.mulf %57, %59 : vector<8x256xbf16>
    %c64 = arith.constant 64 : index
    %c0_28 = arith.constant 0 : index
    %61 = vector.load %arg13[%c64, %c0_28] : memref<72x256xbf16, #tpu.memory_space<vmem>>, vector<8x256xbf16>
    tpu.vector_store %arg13[%c64, %c0_28], %60 {strides = array<i32>} : memref<72x256xbf16, #tpu.memory_space<vmem>>, vector<8x256xbf16>,
    %c0_29 = arith.constant 0 : index
    %c0_30 = arith.constant 0 : index
    %62 = vector.load %arg6[%c0_29, %c0_30] : memref<8x72xbf16, #tpu.memory_space<vmem>>, vector<8x72xbf16>
    %c0_31 = arith.constant 0 : index
    %c0_32 = arith.constant 0 : index
    %63 = vector.load %arg13[%c0_31, %c0_32] : memref<72x256xbf16, #tpu.memory_space<vmem>>, vector<72x256xbf16>
    %cst_33 = arith.constant dense<0.000000e+00> : vector<8x256xf32>
    %64 = tpu.matmul %62, %63, %cst_33 {dimension_numbers = #tpu.dot_dimension_numbers<[1], [0], [0], [1], [0, 0, 1, 1], [], []>} : vector<8x72xbf16>, vector<72x256xbf16>, vector<8x256xf32> -> vector<8x256xf32>
    %c0_34 = arith.constant 0 : index
    %c0_35 = arith.constant 0 : index
    %65 = vector.load %arg7[%c0_34, %c0_35] : memref<8x1xf32, #tpu.memory_space<vmem>>, vector<8x1xf32>
    %66 = vector.broadcast %65 : vector<8x1xf32> to vector<8x256xf32>
    %67 = arith.mulf %64, %66 : vector<8x256xf32>
    %c0_36 = arith.constant 0 : index
    %c0_37 = arith.constant 0 : index
    %68 = vector.load %arg8[%c0_36, %c0_37] : memref<8x1xf32, #tpu.memory_space<vmem>>, vector<8x1xf32>
    %69 = vector.broadcast %68 : vector<8x1xf32> to vector<8x256xf32>
    %70 = arith.addf %67, %69 : vector<8x256xf32>
    %cst_38 = arith.constant 0.000000e+00 : f32
    %71 = vector.broadcast %cst_38 : f32 to vector<8x256xf32>
    %72 = arith.maximumf %70, %71 : vector<8x256xf32>
    %c0_39 = arith.constant 0 : index
    %c0_40 = arith.constant 0 : index
    %73 = vector.load %arg9[%c0_39, %c0_40] : memref<32x8xbf16, #tpu.memory_space<vmem>>, vector<32x8xbf16>
    %74 = arith.truncf %72 : vector<8x256xf32> to vector<8x256xbf16>
    %cst_41 = arith.constant dense<0.000000e+00> : vector<32x256xf32>
    %75 = tpu.matmul %73, %74, %cst_41 {dimension_numbers = #tpu.dot_dimension_numbers<[1], [0], [0], [1], [0, 0, 1, 1], [], []>} : vector<32x8xbf16>, vector<8x256xbf16>, vector<32x256xf32> -> vector<32x256xf32>
    %c0_42 = arith.constant 0 : index
    %c0_43 = arith.constant 0 : index
    %c0_44 = arith.constant 0 : index
    %76 = vector.load %arg1[%c0_42, %c0_43, %c0_44] : memref<1x32x256xbf16, #tpu.memory_space<vmem>>, vector<1x32x256xbf16>
    %77 = vector.shape_cast %76 : vector<1x32x256xbf16> to vector<32x256xbf16>
    %78 = arith.extf %77 : vector<32x256xbf16> to vector<32x256xf32>
    %c0_45 = arith.constant 0 : index
    %c0_46 = arith.constant 0 : index
    %79 = vector.load %arg10[%c0_45, %c0_46] : memref<32x1xf32, #tpu.memory_space<vmem>>, vector<32x1xf32>
    %80 = vector.broadcast %79 : vector<32x1xf32> to vector<32x256xf32>
    %81 = arith.mulf %75, %80 : vector<32x256xf32>
    %c0_47 = arith.constant 0 : index
    %c0_48 = arith.constant 0 : index
    %82 = vector.load %arg11[%c0_47, %c0_48] : memref<32x1xf32, #tpu.memory_space<vmem>>, vector<32x1xf32>
    %83 = vector.broadcast %82 : vector<32x1xf32> to vector<32x256xf32>
    %84 = arith.addf %81, %83 : vector<32x256xf32>
    %85 = arith.addf %84, %78 : vector<32x256xf32>
    %cst_49 = arith.constant 0.000000e+00 : f32
    %86 = vector.broadcast %cst_49 : f32 to vector<32x256xf32>
    %87 = arith.maximumf %85, %86 : vector<32x256xf32>
    %c0_50 = arith.constant 0 : index
    %c0_51 = arith.constant 0 : index
    %c0_52 = arith.constant 0 : index
    %88 = vector.load %arg12[%c0_50, %c0_51, %c0_52] : memref<1x32x256xf32, #tpu.memory_space<vmem>>, vector<1x32x256xf32>
    %89 = vector.shape_cast %88 : vector<1x32x256xf32> to vector<32x256xf32>
    %90 = vector.shape_cast %87 : vector<32x256xf32> to vector<1x32x256xf32>
    tpu.vector_store %arg12[%c0_50, %c0_51, %c0_52], %90 {strides = array<i32>} : memref<1x32x256xf32, #tpu.memory_space<vmem>>, vector<1x32x256xf32>,
    return
  }
  func.func @transform_0(%arg0: i32) -> (i32, i32, i32) {
    %c0_i32 = arith.constant 0 : i32
    %c0_i32_0 = arith.constant 0 : i32
    %c0_i32_1 = arith.constant 0 : i32
    return %arg0, %c0_i32, %c0_i32_0 : i32, i32, i32
  }
  func.func @transform_1(%arg0: i32) -> (i32, i32) {
    %c0_i32 = arith.constant 0 : i32
    %c0_i32_0 = arith.constant 0 : i32
    %c0_i32_1 = arith.constant 0 : i32
    return %c0_i32, %c0_i32_0 : i32, i32
  }
  func.func @transform_2(%arg0: i32) -> (i32, i32) {
    %c0_i32 = arith.constant 0 : i32
    %c0_i32_0 = arith.constant 0 : i32
    %c0_i32_1 = arith.constant 0 : i32
    return %c0_i32, %c0_i32_0 : i32, i32
  }
  func.func @transform_3(%arg0: i32) -> (i32, i32) {
    %c0_i32 = arith.constant 0 : i32
    %c0_i32_0 = arith.constant 0 : i32
    %c0_i32_1 = arith.constant 0 : i32
    return %c0_i32, %c0_i32_0 : i32, i32
  }
  func.func @transform_4(%arg0: i32) -> (i32, i32) {
    %c0_i32 = arith.constant 0 : i32
    %c0_i32_0 = arith.constant 0 : i32
    %c0_i32_1 = arith.constant 0 : i32
    return %c0_i32, %c0_i32_0 : i32, i32
  }
  func.func @transform_5(%arg0: i32) -> (i32, i32) {
    %c0_i32 = arith.constant 0 : i32
    %c0_i32_0 = arith.constant 0 : i32
    %c0_i32_1 = arith.constant 0 : i32
    return %c0_i32, %c0_i32_0 : i32, i32
  }
  func.func @transform_6(%arg0: i32) -> (i32, i32) {
    %c0_i32 = arith.constant 0 : i32
    %c0_i32_0 = arith.constant 0 : i32
    %c0_i32_1 = arith.constant 0 : i32
    return %c0_i32, %c0_i32_0 : i32, i32
  }
  func.func @transform_7(%arg0: i32) -> (i32, i32) {
    %c0_i32 = arith.constant 0 : i32
    %c0_i32_0 = arith.constant 0 : i32
    %c0_i32_1 = arith.constant 0 : i32
    return %c0_i32, %c0_i32_0 : i32, i32
  }
  func.func @transform_8(%arg0: i32) -> (i32, i32) {
    %c0_i32 = arith.constant 0 : i32
    %c0_i32_0 = arith.constant 0 : i32
    %c0_i32_1 = arith.constant 0 : i32
    return %c0_i32, %c0_i32_0 : i32, i32
  }
  func.func @transform_9(%arg0: i32) -> (i32, i32) {
    %c0_i32 = arith.constant 0 : i32
    %c0_i32_0 = arith.constant 0 : i32
    %c0_i32_1 = arith.constant 0 : i32
    return %c0_i32, %c0_i32_0 : i32, i32
  }
  func.func @transform_10(%arg0: i32) -> (i32, i32) {
    %c0_i32 = arith.constant 0 : i32
    %c0_i32_0 = arith.constant 0 : i32
    %c0_i32_1 = arith.constant 0 : i32
    return %c0_i32, %c0_i32_0 : i32, i32
  }
  func.func @transform_11(%arg0: i32) -> (i32, i32, i32) {
    %c0_i32 = arith.constant 0 : i32
    %c0_i32_0 = arith.constant 0 : i32
    %c0_i32_1 = arith.constant 0 : i32
    return %arg0, %c0_i32, %c0_i32_0 : i32, i32, i32
  }
}

</mosaic_0001>

<llo_original>
// kernel: tpu_custom_call.1
$region0: #{tpu_custom_call.1}
  #allocation0 [shape = 'u32[]', space=smem, size = 0x4, offset = 0x4, fixed_abs, tag = 'smem constant byte address 0x4 - core index']
  #allocation1 [shape = 'u32[144,128]{1,0:T(1,128)}', space=vmem, size = 0x12000, scoped, tag = 'internal scratch']
  #allocation2 [shape = 'bf16[72,256]{1,0:T(8,128)(2,1)}', space=vmem, size = 0x9000, scoped, tag = 'scratch operand']
  %s0 = inlined_call_operand.vmem [shape: bf16[2,32,256], index: 0, kind: input, shape index: {}]
  %s1 = inlined_call_operand.vmem [shape: bf16[9,256], index: 1, kind: input, shape index: {}]
  %s2 = inlined_call_operand.vmem [shape: bf16[8,32], index: 2, kind: input, shape index: {}]
  %s3 = inlined_call_operand.vmem [shape: f32[8,1], index: 3, kind: input, shape index: {}]
  %s4 = inlined_call_operand.vmem [shape: f32[8,1], index: 4, kind: input, shape index: {}]
  %s5 = inlined_call_operand.vmem [shape: bf16[8,72], index: 5, kind: input, shape index: {}]
  %s6 = inlined_call_operand.vmem [shape: f32[8,1], index: 6, kind: input, shape index: {}]
  %s7 = inlined_call_operand.vmem [shape: f32[8,1], index: 7, kind: input, shape index: {}]
  %s8 = inlined_call_operand.vmem [shape: bf16[32,8], index: 8, kind: input, shape index: {}]
  %s9 = inlined_call_operand.vmem [shape: f32[32,1], index: 9, kind: input, shape index: {}]
  %s10 = inlined_call_operand.vmem [shape: f32[32,1], index: 10, kind: input, shape index: {}]
  %s11 = inlined_call_operand.hbm [shape: f32[2,32,256], index: 11, kind: output, shape index: {}]
  %s12 = sld [smem:[#allocation0]]
  $region77: #{tpu_custom_call.1} parent=0
    _
  %s14 = ssub.s32 1, %s12
  %s15 = scalar_select 0, %s14, %s12
  $region1: #{tpu_custom_call.1} parent=0
    #allocation3 [shape = 'u8[65536]{0}', space=vmem, size = 0x10000, scoped, tag = 'output window, operand 0']
    #allocation4 [shape = 's32[2]{0}', space=sflag, size = 0x8, scoped, tag = 'scoped memory for tpu_custom_call.1']
    %16 = vsyncpa [#allocation4], 0
    %s17 = scalar_lea.sflag [#allocation4], 1
    %18 = vsyncpa %s17, 0
    loop: start=0, step=1, limit=4
    $region2: #{tpu_custom_call.1} parent=1 // loop_pre_header
      _
    $region3: #{tpu_custom_call.1} parent=1 // loop_header
      %s20 = sphi 0, %s24
      %p21 = scmp.ge.s32.totalorder %s20, 4
      %s30 = sphi 0, %s32
      %s33 = sphi 0, %s30
      %s34 = sphi 0, %s33
      %s50 = sphi 0, %s34
      %s54 = sphi 0, %s54
      %s56 = sphi 0, %s54
      %s57 = sphi 0, %s56
      %s71 = sphi 0, %s57
      %s75 = sphi 0, %s75
      %s77 = sphi 0, %s75
      %s78 = sphi 0, %s77
      %s92 = sphi 0, %s78
      %s96 = sphi 0, %s96
      %s98 = sphi 0, %s96
      %s99 = sphi 0, %s98
      %s113 = sphi 0, %s99
      %s117 = sphi 0, %s117
      %s119 = sphi 0, %s117
      %s120 = sphi 0, %s119
      %s134 = sphi 0, %s120
      %s138 = sphi 0, %s138
      %s140 = sphi 0, %s138
      %s141 = sphi 0, %s140
      %s155 = sphi 0, %s141
      %s159 = sphi 0, %s159
      %s161 = sphi 0, %s159
      %s162 = sphi 0, %s161
      %s176 = sphi 0, %s162
      %s180 = sphi 0, %s180
      %s182 = sphi 0, %s180
      %s183 = sphi 0, %s182
      %s197 = sphi 0, %s183
      %s201 = sphi 0, %s201
      %s203 = sphi 0, %s201
      %s204 = sphi 0, %s203
      %s218 = sphi 0, %s204
      %s222 = sphi 0, %s222
      %s224 = sphi 0, %s222
      %s225 = sphi 0, %s224
      %s239 = sphi 0, %s225
      %s243 = sphi 0, %s243
      %s245 = sphi 0, %s243
      %s246 = sphi 0, %s245
      %s260 = sphi 0, %s246
      %s266 = sphi 0, %s268
      %s269 = sphi 0, %s266
      %s270 = sphi 0, %s269
      %s286 = sphi 0, %s270
    $region4: #{tpu_custom_call.1} parent=1 // loop_header_branch
      %23 = sbr.rel (%p21) target = $region8
    $region5: #{tpu_custom_call.1} parent=1 // loop_body
      %s25 = ssub.s32 %s20, 1
      %s26 = ssub.s32 %s20, 2
      %s27 = sadd.s32 %s20, 1
      %s28 = ssub.s32 %s20, %s27
      %p29 = scmp.eq.s32.totalorder %s28, 0
      %s31 = sadd.s32 %s30, 1
      %s32 = scalar_select %p29, %s30, %s31
      %p35 = pneg %p29
      %p36 = scmp.eq.s32.totalorder %s20, 1
      %p37 = por %p35, %p36
      %p38 = scmp.ne.s32.totalorder %s30, %s33
      %p39 = scmp.eq.s32.totalorder %s20, 0
      %p40 = por %p38, %p39
      %p41 = scmp.ne.s32.totalorder %s30, %s33
      %p42 = scmp.eq.s32.totalorder %s25, 1
      %p43 = por %p41, %p42
      %p44 = scmp.ne.s32.totalorder %s33, %s34
      %p45 = scmp.eq.s32.totalorder %s25, 0
      %p46 = por %p44, %p45
      %p47 = scmp.ne.s32.totalorder %s33, %s34
      %p48 = scmp.eq.s32.totalorder %s26, 1
      %p49 = por %p47, %p48
      %p51 = scmp.ne.s32.totalorder %s34, %s50
      %p52 = scmp.eq.s32.totalorder %s26, 0
      %p53 = por %p51, %p52
      %s55 = sadd.s32 %s54, 1
      %p58 = scmp.eq.s32.totalorder %s20, 1
      %p59 = scmp.ne.s32.totalorder %s54, %s56
      %p60 = scmp.eq.s32.totalorder %s20, 0
      %p61 = por %p59, %p60
      %p62 = scmp.ne.s32.totalorder %s54, %s56
      %p63 = scmp.eq.s32.totalorder %s25, 1
      %p64 = por %p62, %p63
      %p65 = scmp.ne.s32.totalorder %s56, %s57
      %p66 = scmp.eq.s32.totalorder %s25, 0
      %p67 = por %p65, %p66
      %p68 = scmp.ne.s32.totalorder %s56, %s57
      %p69 = scmp.eq.s32.totalorder %s26, 1
      %p70 = por %p68, %p69
      %p72 = scmp.ne.s32.totalorder %s57, %s71
      %p73 = scmp.eq.s32.totalorder %s26, 0
      %p74 = por %p72, %p73
      %s76 = sadd.s32 %s75, 1
      %p79 = scmp.eq.s32.totalorder %s20, 1
      %p80 = scmp.ne.s32.totalorder %s75, %s77
      %p81 = scmp.eq.s32.totalorder %s20, 0
      %p82 = por %p80, %p81
      %p83 = scmp.ne.s32.totalorder %s75, %s77
      %p84 = scmp.eq.s32.totalorder %s25, 1
      %p85 = por %p83, %p84
      %p86 = scmp.ne.s32.totalorder %s77, %s78
      %p87 = scmp.eq.s32.totalorder %s25, 0
      %p88 = por %p86, %p87
      %p89 = scmp.ne.s32.totalorder %s77, %s78
      %p90 = scmp.eq.s32.totalorder %s26, 1
      %p91 = por %p89, %p90
      %p93 = scmp.ne.s32.totalorder %s78, %s92
      %p94 = scmp.eq.s32.totalorder %s26, 0
      %p95 = por %p93, %p94
      %s97 = sadd.s32 %s96, 1
      %p100 = scmp.eq.s32.totalorder %s20, 1
      %p101 = scmp.ne.s32.totalorder %s96, %s98
      %p102 = scmp.eq.s32.totalorder %s20, 0
      %p103 = por %p101, %p102
      %p104 = scmp.ne.s32.totalorder %s96, %s98
      %p105 = scmp.eq.s32.totalorder %s25, 1
      %p106 = por %p104, %p105
      %p107 = scmp.ne.s32.totalorder %s98, %s99
      %p108 = scmp.eq.s32.totalorder %s25, 0
      %p109 = por %p107, %p108
      %p110 = scmp.ne.s32.totalorder %s98, %s99
      %p111 = scmp.eq.s32.totalorder %s26, 1
      %p112 = por %p110, %p111
      %p114 = scmp.ne.s32.totalorder %s99, %s113
      %p115 = scmp.eq.s32.totalorder %s26, 0
      %p116 = por %p114, %p115
      %s118 = sadd.s32 %s117, 1
      %p121 = scmp.eq.s32.totalorder %s20, 1
      %p122 = scmp.ne.s32.totalorder %s117, %s119
      %p123 = scmp.eq.s32.totalorder %s20, 0
      %p124 = por %p122, %p123
      %p125 = scmp.ne.s32.totalorder %s117, %s119
      %p126 = scmp.eq.s32.totalorder %s25, 1
      %p127 = por %p125, %p126
      %p128 = scmp.ne.s32.totalorder %s119, %s120
      %p129 = scmp.eq.s32.totalorder %s25, 0
      %p130 = por %p128, %p129
      %p131 = scmp.ne.s32.totalorder %s119, %s120
      %p132 = scmp.eq.s32.totalorder %s26, 1
      %p133 = por %p131, %p132
      %p135 = scmp.ne.s32.totalorder %s120, %s134
      %p136 = scmp.eq.s32.totalorder %s26, 0
      %p137 = por %p135, %p136
      %s139 = sadd.s32 %s138, 1
      %p142 = scmp.eq.s32.totalorder %s20, 1
      %p143 = scmp.ne.s32.totalorder %s138, %s140
      %p144 = scmp.eq.s32.totalorder %s20, 0
      %p145 = por %p143, %p144
      %p146 = scmp.ne.s32.totalorder %s138, %s140
      %p147 = scmp.eq.s32.totalorder %s25, 1
      %p148 = por %p146, %p147
      %p149 = scmp.ne.s32.totalorder %s140, %s141
      %p150 = scmp.eq.s32.totalorder %s25, 0
      %p151 = por %p149, %p150
      %p152 = scmp.ne.s32.totalorder %s140, %s141
      %p153 = scmp.eq.s32.totalorder %s26, 1
      %p154 = por %p152, %p153
      %p156 = scmp.ne.s32.totalorder %s141, %s155
      %p157 = scmp.eq.s32.totalorder %s26, 0
      %p158 = por %p156, %p157
      %s160 = sadd.s32 %s159, 1
      %p163 = scmp.eq.s32.totalorder %s20, 1
      %p164 = scmp.ne.s32.totalorder %s159, %s161
      %p165 = scmp.eq.s32.totalorder %s20, 0
      %p166 = por %p164, %p165
      %p167 = scmp.ne.s32.totalorder %s159, %s161
      %p168 = scmp.eq.s32.totalorder %s25, 1
      %p169 = por %p167, %p168
      %p170 = scmp.ne.s32.totalorder %s161, %s162
      %p171 = scmp.eq.s32.totalorder %s25, 0
      %p172 = por %p170, %p171
      %p173 = scmp.ne.s32.totalorder %s161, %s162
      %p174 = scmp.eq.s32.totalorder %s26, 1
      %p175 = por %p173, %p174
      %p177 = scmp.ne.s32.totalorder %s162, %s176
      %p178 = scmp.eq.s32.totalorder %s26, 0
      %p179 = por %p177, %p178
      %s181 = sadd.s32 %s180, 1
      %p184 = scmp.eq.s32.totalorder %s20, 1
      %p185 = scmp.ne.s32.totalorder %s180, %s182
      %p186 = scmp.eq.s32.totalorder %s20, 0
      %p187 = por %p185, %p186
      %p188 = scmp.ne.s32.totalorder %s180, %s182
      %p189 = scmp.eq.s32.totalorder %s25, 1
      %p190 = por %p188, %p189
      %p191 = scmp.ne.s32.totalorder %s182, %s183
      %p192 = scmp.eq.s32.totalorder %s25, 0
      %p193 = por %p191, %p192
      %p194 = scmp.ne.s32.totalorder %s182, %s183
      %p195 = scmp.eq.s32.totalorder %s26, 1
      %p196 = por %p194, %p195
      %p198 = scmp.ne.s32.totalorder %s183, %s197
      %p199 = scmp.eq.s32.totalorder %s26, 0
      %p200 = por %p198, %p199
      %s202 = sadd.s32 %s201, 1
      %p205 = scmp.eq.s32.totalorder %s20, 1
      %p206 = scmp.ne.s32.totalorder %s201, %s203
      %p207 = scmp.eq.s32.totalorder %s20, 0
      %p208 = por %p206, %p207
      %p209 = scmp.ne.s32.totalorder %s201, %s203
      %p210 = scmp.eq.s32.totalorder %s25, 1
      %p211 = por %p209, %p210
      %p212 = scmp.ne.s32.totalorder %s203, %s204
      %p213 = scmp.eq.s32.totalorder %s25, 0
      %p214 = por %p212, %p213
      %p215 = scmp.ne.s32.totalorder %s203, %s204
      %p216 = scmp.eq.s32.totalorder %s26, 1
      %p217 = por %p215, %p216
      %p219 = scmp.ne.s32.totalorder %s204, %s218
      %p220 = scmp.eq.s32.totalorder %s26, 0
      %p221 = por %p219, %p220
      %s223 = sadd.s32 %s222, 1
      %p226 = scmp.eq.s32.totalorder %s20, 1
      %p227 = scmp.ne.s32.totalorder %s222, %s224
      %p228 = scmp.eq.s32.totalorder %s20, 0
      %p229 = por %p227, %p228
      %p230 = scmp.ne.s32.totalorder %s222, %s224
      %p231 = scmp.eq.s32.totalorder %s25, 1
      %p232 = por %p230, %p231
      %p233 = scmp.ne.s32.totalorder %s224, %s225
      %p234 = scmp.eq.s32.totalorder %s25, 0
      %p235 = por %p233, %p234
      %p236 = scmp.ne.s32.totalorder %s224, %s225
      %p237 = scmp.eq.s32.totalorder %s26, 1
      %p238 = por %p236, %p237
      %p240 = scmp.ne.s32.totalorder %s225, %s239
      %p241 = scmp.eq.s32.totalorder %s26, 0
      %p242 = por %p240, %p241
      %s244 = sadd.s32 %s243, 1
      %p247 = scmp.eq.s32.totalorder %s20, 1
      %p248 = scmp.ne.s32.totalorder %s243, %s245
      %p249 = scmp.eq.s32.totalorder %s20, 0
      %p250 = por %p248, %p249
      %p251 = scmp.ne.s32.totalorder %s243, %s245
      %p252 = scmp.eq.s32.totalorder %s25, 1
      %p253 = por %p251, %p252
      %p254 = scmp.ne.s32.totalorder %s245, %s246
      %p255 = scmp.eq.s32.totalorder %s25, 0
      %p256 = por %p254, %p255
      %p257 = scmp.ne.s32.totalorder %s245, %s246
      %p258 = scmp.eq.s32.totalorder %s26, 1
      %p259 = por %p257, %p258
      %p261 = scmp.ne.s32.totalorder %s246, %s260
      %p262 = scmp.eq.s32.totalorder %s26, 0
      %p263 = por %p261, %p262
      %s264 = ssub.s32 %s20, %s27
      %p265 = scmp.eq.s32.totalorder %s264, 0
      %s267 = sadd.s32 %s266, 1
      %s268 = scalar_select %p265, %s266, %s267
      %p271 = pneg %p265
      %p272 = scmp.eq.s32.totalorder %s20, 1
      %p273 = por %p271, %p272
      %p274 = scmp.ne.s32.totalorder %s266, %s269
      %p275 = scmp.eq.s32.totalorder %s20, 0
      %p276 = por %p274, %p275
      %p277 = scmp.ne.s32.totalorder %s266, %s269
      %p278 = scmp.eq.s32.totalorder %s25, 1
      %p279 = por %p277, %p278
      %p280 = scmp.ne.s32.totalorder %s269, %s270
      %p281 = scmp.eq.s32.totalorder %s25, 0
      %p282 = por %p280, %p281
      %p283 = scmp.ne.s32.totalorder %s269, %s270
      %p284 = scmp.eq.s32.totalorder %s26, 1
      %p285 = por %p283, %p284
      %p287 = scmp.ne.s32.totalorder %s270, %s286
      %p288 = scmp.eq.s32.totalorder %s26, 0
      %p289 = por %p287, %p288
      %p290 = scmp.le.s32.totalorder 1, %s20
      %p291 = scmp.lt.s32.totalorder %s20, 3
      %p292 = pnand %p290, %p291
      %p293 = pneg %p292
      // Predicated region
      $region9: #{tpu_custom_call.1} parent=5 // pred_check
        _
      $region10: #{tpu_custom_call.1} parent=5 // pred_check_branch
        %295 = sbr.rel (%p292) target = $region12
      $region11: #{tpu_custom_call.1} parent=5 // pred_region
        %s296 = ssub.s32 %s20, 1
        // Predicated region
        $region13: #{tpu_custom_call.1} parent=11 // pred_check
          %p297 = pneg %p67
        $region14: #{tpu_custom_call.1} parent=11 // pred_check_branch
          %299 = sbr.rel (%p297) target = $region16
        $region15: #{tpu_custom_call.1} parent=11 // pred_region
          _
        $region16: #{tpu_custom_call.1} parent=11 // pred_fallthru
          _
        // Predicated region
        $region17: #{tpu_custom_call.1} parent=11 // pred_check
          %p300 = pneg %p88
        $region18: #{tpu_custom_call.1} parent=11 // pred_check_branch
          %302 = sbr.rel (%p300) target = $region20
        $region19: #{tpu_custom_call.1} parent=11 // pred_region
          _
        $region20: #{tpu_custom_call.1} parent=11 // pred_fallthru
          _
        // Predicated region
        $region21: #{tpu_custom_call.1} parent=11 // pred_check
          %p303 = pneg %p109
        $region22: #{tpu_custom_call.1} parent=11 // pred_check_branch
          %305 = sbr.rel (%p303) target = $region24
        $region23: #{tpu_custom_call.1} parent=11 // pred_region
          _
        $region24: #{tpu_custom_call.1} parent=11 // pred_fallthru
          _
        // Predicated region
        $region25: #{tpu_custom_call.1} parent=11 // pred_check
          %p306 = pneg %p130
        $region26: #{tpu_custom_call.1} parent=11 // pred_check_branch
          %308 = sbr.rel (%p306) target = $region28
        $region27: #{tpu_custom_call.1} parent=11 // pred_region
          _
        $region28: #{tpu_custom_call.1} parent=11 // pred_fallthru
          _
        // Predicated region
        $region29: #{tpu_custom_call.1} parent=11 // pred_check
          %p309 = pneg %p151
        $region30: #{tpu_custom_call.1} parent=11 // pred_check_branch
          %311 = sbr.rel (%p309) target = $region32
        $region31: #{tpu_custom_call.1} parent=11 // pred_region
          _
        $region32: #{tpu_custom_call.1} parent=11 // pred_fallthru
          _
        // Predicated region
        $region33: #{tpu_custom_call.1} parent=11 // pred_check
          %p312 = pneg %p172
        $region34: #{tpu_custom_call.1} parent=11 // pred_check_branch
          %314 = sbr.rel (%p312) target = $region36
        $region35: #{tpu_custom_call.1} parent=11 // pred_region
          _
        $region36: #{tpu_custom_call.1} parent=11 // pred_fallthru
          _
        // Predicated region
        $region37: #{tpu_custom_call.1} parent=11 // pred_check
          %p315 = pneg %p193
        $region38: #{tpu_custom_call.1} parent=11 // pred_check_branch
          %317 = sbr.rel (%p315) target = $region40
        $region39: #{tpu_custom_call.1} parent=11 // pred_region
          _
        $region40: #{tpu_custom_call.1} parent=11 // pred_fallthru
          _
        // Predicated region
        $region41: #{tpu_custom_call.1} parent=11 // pred_check
          %p318 = pneg %p214
        $region42: #{tpu_custom_call.1} parent=11 // pred_check_branch
          %320 = sbr.rel (%p318) target = $region44
        $region43: #{tpu_custom_call.1} parent=11 // pred_region
          _
        $region44: #{tpu_custom_call.1} parent=11 // pred_fallthru
          _
        // Predicated region
        $region45: #{tpu_custom_call.1} parent=11 // pred_check
          %p321 = pneg %p235
        $region46: #{tpu_custom_call.1} parent=11 // pred_check_branch
          %323 = sbr.rel (%p321) target = $region48
        $region47: #{tpu_custom_call.1} parent=11 // pred_region
          _
        $region48: #{tpu_custom_call.1} parent=11 // pred_fallthru
          _
        // Predicated region
        $region49: #{tpu_custom_call.1} parent=11 // pred_check
          %p324 = pneg %p256
        $region50: #{tpu_custom_call.1} parent=11 // pred_check_branch
          %326 = sbr.rel (%p324) target = $region52
        $region51: #{tpu_custom_call.1} parent=11 // pred_region
          _
        $region52: #{tpu_custom_call.1} parent=11 // pred_fallthru
          _
      $region12: #{tpu_custom_call.1} parent=5 // pred_fallthru
        _
      %p327 = scmp.lt.s32.totalorder %s20, 2
      // Predicated region
      $region53: #{tpu_custom_call.1} parent=5 // pred_check
        %p328 = pneg %p327
      $region54: #{tpu_custom_call.1} parent=5 // pred_check_branch
        %330 = sbr.rel (%p328) target = $region56
      $region55: #{tpu_custom_call.1} parent=5 // pred_region
        // Predicated region
        $region57: #{tpu_custom_call.1} parent=55 // pred_check
          %p331 = pneg %p40
        $region58: #{tpu_custom_call.1} parent=55 // pred_check_branch
          %333 = sbr.rel (%p331) target = $region60
        $region59: #{tpu_custom_call.1} parent=55 // pred_region
          %p334 = scmp.lt.s32.totalorder %s20, 1
          %s335 = scalar_select %p334, %s20, 1
          %s336 = smul.addr %s335, 8
          %s337 = smul.addr %s336, 4
          %s338 = scalar_lea.vmem %s0, %s337
        $region60: #{tpu_custom_call.1} parent=55 // pred_fallthru
          _
      $region56: #{tpu_custom_call.1} parent=5 // pred_fallthru
        _
      %p339 = scmp.le.s32.totalorder 1, %s20
      %p340 = scmp.lt.s32.totalorder %s20, 3
      %p341 = pnand %p339, %p340
      %p342 = pneg %p341
      // Predicated region
      $region61: #{tpu_custom_call.1} parent=5 // pred_check
        _
      $region62: #{tpu_custom_call.1} parent=5 // pred_check_branch
        %344 = sbr.rel (%p341) target = $region64
      $region63: #{tpu_custom_call.1} parent=5 // pred_region
        %s345 = ssub.s32 %s20, 1
        %p346 = scmp.lt.s32.totalorder %s25, 1
        %s347 = scalar_select %p346, %s25, 1
        %s348 = smul.addr %s347, 8
        %s349 = smul.addr %s348, 4
        %s350 = scalar_lea.vmem %s0, %s349
        %p351 = pneg %p46
        %p352 = pneg %p43
        %p353 = pneg %p67
        %p354 = pneg %p64
        %p355 = pneg %p88
        %p356 = pneg %p85
        %p357 = pneg %p109
        %p358 = pneg %p106
        %p359 = pneg %p130
        %p360 = pneg %p127
        %p361 = pneg %p151
        %p362 = pneg %p148
        %p363 = pneg %p172
        %p364 = pneg %p169
        %p365 = pneg %p193
        %p366 = pneg %p190
        %p367 = pneg %p214
        %p368 = pneg %p211
        %p369 = pneg %p235
        %p370 = pneg %p232
        %p371 = pneg %p256
        %p372 = pneg %p253
        %p373 = pneg %p282
        %p374 = pneg %p279
        %s375 = sand.u32 %s269, 1
        %s376 = scalar_lea.sflag [#allocation4], %s375
        %s377 = sand.u32 %s269, 1
        %s378 = smul.addr %s377, 64
        %s379 = scalar_lea.vmem [#allocation3], %s378
        %p380 = scmp.lt.s32.totalorder %s25, 1
        %s381 = scalar_select %p380, %s25, 1
        %s382 = smul.addr %s381, 8
        %s383 = smul.addr %s382, 4
        %s384 = scalar_lea.vmem %s0, %s383
        %v386 = vld [vmem:[%s2] sm:$0xf]
        %v387 = vld [vmem:[%s384] sm:$0xff]
        %v388 = vld [vmem:[%s384 + $0x8] sm:$0xff]
        %v389 = vld [vmem:[%s384 + $0x10] sm:$0xff]
        %v390 = vld [vmem:[%s384 + $0x18] sm:$0xff]
        %v395 = vunpack.c.l.b16 %v387
        %v396 = vunpack.c.h.b16 %v387
        %v397 = vunpack.c.l.b16 %v388
        %v398 = vunpack.c.h.b16 %v388
        %v399 = vunpack.c.l.b16 %v389
        %v400 = vunpack.c.h.b16 %v389
        %v401 = vunpack.c.l.b16 %v390
        %v402 = vunpack.c.h.b16 %v390
        %v403 = vpack.c.b16 %v397, %v395
        %v404 = vpack.c.b16 %v398, %v396
        %v405 = vpack.c.b16 %v401, %v399
        %v406 = vpack.c.b16 %v402, %v400
        %vm411 = vcmask 261120
        %v413 = vsel %vm411, %v386, 0
        %415 = vmatprep.subr.bf16.mxu0 0
        %416 = vmatpush1.bf16.msra.mxu0 0
        %417 = vmatprep.subr.bf16.mxu0 0
        %418 = vmatpush1.bf16.msra.mxu0 0
        %419 = vmatprep.subr.bf16.mxu0 0
        %420 = vmatpush1.bf16.msra.mxu0 0
        %421 = vmatprep.subr.bf16.mxu0 0
        %422 = vmatpush1.bf16.msra.mxu0 0
        %423 = vmatprep.subr.bf16.mxu0 0
        %424 = vmatpush1.bf16.msra.mxu0 0
        %425 = vmatprep.subr.bf16.mxu0 0
        %426 = vmatpush1.bf16.msra.mxu0 0
        %427 = vmatprep.subr.bf16.mxu0 %v406
        %428 = vmatpush1.bf16.msra.mxu0 %v405
        %429 = vmatprep.subr.bf16.mxu0 %v404
        %430 = vmatpush1.bf16.msra.mxu0 %v403
        %431 = vmatprep.subr.bf16.mxu0 0
        %432 = vmatpush2.bf16.msra.mxu0 0
        %433 = vmatprep.subr.bf16.mxu0 0
        %434 = vmatpush2.bf16.msra.mxu0 0
        %435 = vmatprep.subr.bf16.mxu0 0
        %436 = vmatpush2.bf16.msra.mxu0 0
        %437 = vmatprep.subr.bf16.mxu0 0
        %438 = vmatpush2.bf16.msra.mxu0 0
        %439 = vmatprep.subr.bf16.mxu0 0
        %440 = vmatpush2.bf16.msra.mxu0 0
        %441 = vmatprep.subr.bf16.mxu0 0
        %442 = vmatpush2.bf16.msra.mxu0 0
        %443 = vmatprep.subr.bf16.mxu0 0
        %444 = vmatpush2.bf16.msra.mxu0 0
        %445 = vmatprep.subr.bf16.mxu0 0
        %446 = vmatpush2.bf16.msra.mxu0 0
        %447 = vmatprep.mubr.bf16.mxu0 0
        %448 = vmatmul.mubr.bf16.gmra.mxu0 %v413
        %v449 = vpop.f32.mrf.mxu0
        %v450 = vadd.f32 0.0, %v449
        %v451 = vpop.f32.mrf.mxu0
        %v452 = vadd.f32 0.0, %v451
        %v453 = vpop.f32.mrf.mxu0
        %v454 = vpop.f32.mrf.mxu0
        %455 = vdwg.mxu0
        %v456 = vld [vmem:[%s3] sm:$0xff]
        %458 = vset.pattern.permute.xlu0 0
        %459 = vperm.xlu0 %458, %v456
        %v460 = vpop.permute.xlu0 %459
        %v462 = vmul.f32 %v450, %v460
        %v463 = vmul.f32 %v452, %v460
        %v464 = vld [vmem:[%s4] sm:$0xff]
        %466 = vset.pattern.permute.xlu0 0
        %467 = vperm.xlu0 %466, %v464
        %v468 = vpop.permute.xlu0 %467
        %v470 = vadd.f32 %v462, %v468
        %v471 = vadd.f32 %v463, %v468
        %v472 = vmax.f32 %v470, 0.0
        %v473 = vmax.f32 %v471, 0.0
        %v474 = vpack.c.bf16 %v472, %v472
        %v475 = vpack.c.bf16 %v473, %v473
        %476 = vrot.lane.b32.xlu0 %v472, 17
        %v477 = vpop.permute.xlu0 %476
        %478 = vrot.lane.b32.xlu0 %v473, 17
        %v479 = vpop.permute.xlu0 %478
        %v480 = vlaneseq
        %v481 = vand.u32 %v480, 127
        %vm482 = vcmp.lt.s32.totalorder %v481, 17
        %v483 = vsel %vm482, %v477, %v479
        %v484 = vsel %vm482, %v479, %v477
        %v485 = vpack.c.bf16 %v484, %v484
        %v486 = vpack.c.bf16 %v483, %v483
        %v487 = vld [vmem:[%s1] sm:$0x11]
        %v489 = vunpack.c.l.b16 %v487
        %v490 = vunpack.c.h.b16 %v487
        %v491 = vpack.c.b16 %v489, %v489
        %v492 = vpack.c.b16 %v490, %v490
        %v494 = vpack.i.b16 %v491, %v491
        %v496 = vlaneseq
        %v497 = vshrl.u32 %v496, 7
        %v498 = vsub.s32 0, %v497
        %v499 = vrot.slane %v494, %v498
        %v501 = vpack.i.b16 %v492, %v492
        %v503 = vlaneseq
        %v504 = vshrl.u32 %v503, 7
        %v505 = vsub.s32 0, %v504
        %v506 = vrot.slane %v501, %v505
        %v507 = vmul.bf16 %v485, %v499
        %v508 = vmul.bf16 %v486, %v506
        %v511 = vunpack.c.l.b16 %v507
        %v512 = vunpack.c.l.b16 %v508
        %v513 = vpack.c.b16 %v512, %v511
        %515 = vst [vmem:[#allocation2] sm:$0xff] %v513
        %516 = vrot.lane.b32.xlu0 %v472, 16
        %v517 = vpop.permute.xlu0 %516
        %518 = vrot.lane.b32.xlu0 %v473, 16
        %v519 = vpop.permute.xlu0 %518
        %vm520 = vcmp.lt.s32.totalorder %v481, 16
        %v521 = vsel %vm520, %v517, %v519
        %v522 = vsel %vm520, %v519, %v517
        %v523 = vpack.c.bf16 %v522, %v522
        %v524 = vpack.c.bf16 %v521, %v521
        %v525 = vld [vmem:[%s1] sm:$0x11]
        %v527 = vunpack.c.l.b16 %v525
        %v528 = vunpack.c.h.b16 %v525
        %v529 = vpack.c.b16 %v527, %v527
        %v530 = vpack.c.b16 %v528, %v528
        %v532 = vshrl.u32 %v529, 16
        %v533 = vpack.i.b16 %v532, %v532
        %v535 = vlaneseq
        %v536 = vshrl.u32 %v535, 7
        %v537 = vsub.s32 0, %v536
        %v538 = vrot.slane %v533, %v537
        %v540 = vshrl.u32 %v530, 16
        %v541 = vpack.i.b16 %v540, %v540
        %v543 = vlaneseq
        %v544 = vshrl.u32 %v543, 7
        %v545 = vsub.s32 0, %v544
        %v546 = vrot.slane %v541, %v545
        %v547 = vmul.bf16 %v523, %v538
        %v548 = vmul.bf16 %v524, %v546
        %v551 = vunpack.c.l.b16 %v547
        %v552 = vunpack.c.l.b16 %v548
        %v553 = vpack.c.b16 %v552, %v551
        %555 = vst [vmem:[#allocation2 + $0x8] sm:$0xff] %v553
        %556 = vrot.lane.b32.xlu0 %v472, 15
        %v557 = vpop.permute.xlu0 %556
        %558 = vrot.lane.b32.xlu0 %v473, 15
        %v559 = vpop.permute.xlu0 %558
        %vm560 = vcmp.lt.s32.totalorder %v481, 15
        %v561 = vsel %vm560, %v557, %v559
        %v562 = vsel %vm560, %v559, %v557
        %v563 = vpack.c.bf16 %v562, %v562
        %v564 = vpack.c.bf16 %v561, %v561
        %v565 = vld [vmem:[%s1] sm:$0x22]
        %v567 = vunpack.c.l.b16 %v565
        %v568 = vunpack.c.h.b16 %v565
        %v569 = vpack.c.b16 %v567, %v567
        %v570 = vpack.c.b16 %v568, %v568
        %v572 = vpack.i.b16 %v569, %v569
        %v574 = vlaneseq
        %v575 = vshrl.u32 %v574, 7
        %v576 = vsub.s32 1, %v575
        %v577 = vrot.slane %v572, %v576
        %v579 = vpack.i.b16 %v570, %v570
        %v581 = vlaneseq
        %v582 = vshrl.u32 %v581, 7
        %v583 = vsub.s32 1, %v582
        %v584 = vrot.slane %v579, %v583
        %v585 = vmul.bf16 %v563, %v577
        %v586 = vmul.bf16 %v564, %v584
        %v589 = vunpack.c.l.b16 %v585
        %v590 = vunpack.c.l.b16 %v586
        %v591 = vpack.c.b16 %v590, %v589
        %593 = vst [vmem:[#allocation2 + $0x10] sm:$0xff] %v591
        %594 = vrot.lane.b32.xlu0 %v472, 1
        %v595 = vpop.permute.xlu0 %594
        %596 = vrot.lane.b32.xlu0 %v473, 1
        %v597 = vpop.permute.xlu0 %596
        %vm598 = vcmp.lt.s32.totalorder %v481, 1
        %v599 = vsel %vm598, %v595, %v597
        %v600 = vsel %vm598, %v597, %v595
        %v601 = vpack.c.bf16 %v600, %v600
        %v602 = vpack.c.bf16 %v599, %v599
        %v603 = vld [vmem:[%s1] sm:$0x22]
        %v605 = vunpack.c.l.b16 %v603
        %v606 = vunpack.c.h.b16 %v603
        %v607 = vpack.c.b16 %v605, %v605
        %v608 = vpack.c.b16 %v606, %v606
        %v610 = vshrl.u32 %v607, 16
        %v611 = vpack.i.b16 %v610, %v610
        %v613 = vlaneseq
        %v614 = vshrl.u32 %v613, 7
        %v615 = vsub.s32 1, %v614
        %v616 = vrot.slane %v611, %v615
        %v618 = vshrl.u32 %v608, 16
        %v619 = vpack.i.b16 %v618, %v618
        %v621 = vlaneseq
        %v622 = vshrl.u32 %v621, 7
        %v623 = vsub.s32 1, %v622
        %v624 = vrot.slane %v619, %v623
        %v625 = vmul.bf16 %v601, %v616
        %v626 = vmul.bf16 %v602, %v624
        %v629 = vunpack.c.l.b16 %v625
        %v630 = vunpack.c.l.b16 %v626
        %v631 = vpack.c.b16 %v630, %v629
        %633 = vst [vmem:[#allocation2 + $0x18] sm:$0xff] %v631
        %v636 = vunpack.c.l.b16 %v474
        %v637 = vunpack.c.l.b16 %v475
        %v638 = vpack.c.b16 %v637, %v636
        %640 = vst [vmem:[#allocation2 + $0x20] sm:$0xff] %v638
        %641 = vrot.lane.b32.xlu0 %v472, 127
        %v642 = vpop.permute.xlu0 %641
        %643 = vrot.lane.b32.xlu0 %v473, 127
        %v644 = vpop.permute.xlu0 %643
        %vm645 = vcmp.lt.s32.totalorder %v481, 127
        %v646 = vsel %vm645, %v642, %v644
        %v647 = vsel %vm645, %v644, %v642
        %v648 = vpack.c.bf16 %v646, %v646
        %v649 = vpack.c.bf16 %v647, %v647
        %v650 = vld [vmem:[%s1] sm:$0x44]
        %v652 = vunpack.c.l.b16 %v650
        %v653 = vunpack.c.h.b16 %v650
        %v654 = vpack.c.b16 %v652, %v652
        %v655 = vpack.c.b16 %v653, %v653
        %v657 = vshrl.u32 %v654, 16
        %v658 = vpack.i.b16 %v657, %v657
        %v660 = vlaneseq
        %v661 = vshrl.u32 %v660, 7
        %v662 = vsub.s32 2, %v661
        %v663 = vrot.slane %v658, %v662
        %v665 = vshrl.u32 %v655, 16
        %v666 = vpack.i.b16 %v665, %v665
        %v668 = vlaneseq
        %v669 = vshrl.u32 %v668, 7
        %v670 = vsub.s32 2, %v669
        %v671 = vrot.slane %v666, %v670
        %v672 = vmul.bf16 %v648, %v663
        %v673 = vmul.bf16 %v649, %v671
        %v676 = vunpack.c.l.b16 %v672
        %v677 = vunpack.c.l.b16 %v673
        %v678 = vpack.c.b16 %v677, %v676
        %680 = vst [vmem:[#allocation2 + $0x28] sm:$0xff] %v678
        %681 = vrot.lane.b32.xlu0 %v472, 113
        %v682 = vpop.permute.xlu0 %681
        %683 = vrot.lane.b32.xlu0 %v473, 113
        %v684 = vpop.permute.xlu0 %683
        %vm685 = vcmp.lt.s32.totalorder %v481, 113
        %v686 = vsel %vm685, %v682, %v684
        %v687 = vsel %vm685, %v684, %v682
        %v688 = vpack.c.bf16 %v686, %v686
        %v689 = vpack.c.bf16 %v687, %v687
        %v690 = vld [vmem:[%s1] sm:$0x88]
        %v692 = vunpack.c.l.b16 %v690
        %v693 = vunpack.c.h.b16 %v690
        %v694 = vpack.c.b16 %v692, %v692
        %v695 = vpack.c.b16 %v693, %v693
        %v697 = vpack.i.b16 %v694, %v694
        %v699 = vlaneseq
        %v700 = vshrl.u32 %v699, 7
        %v701 = vsub.s32 3, %v700
        %v702 = vrot.slane %v697, %v701
        %v704 = vpack.i.b16 %v695, %v695
        %v706 = vlaneseq
        %v707 = vshrl.u32 %v706, 7
        %v708 = vsub.s32 3, %v707
        %v709 = vrot.slane %v704, %v708
        %v710 = vmul.bf16 %v688, %v702
        %v711 = vmul.bf16 %v689, %v709
        %v714 = vunpack.c.l.b16 %v710
        %v715 = vunpack.c.l.b16 %v711
        %v716 = vpack.c.b16 %v715, %v714
        %718 = vst [vmem:[#allocation2 + $0x30] sm:$0xff] %v716
        %719 = vrot.lane.b32.xlu0 %v472, 112
        %v720 = vpop.permute.xlu0 %719
        %721 = vrot.lane.b32.xlu0 %v473, 112
        %v722 = vpop.permute.xlu0 %721
        %vm723 = vcmp.lt.s32.totalorder %v481, 112
        %v724 = vsel %vm723, %v720, %v722
        %v725 = vsel %vm723, %v722, %v720
        %v726 = vpack.c.bf16 %v724, %v724
        %v727 = vpack.c.bf16 %v725, %v725
        %v728 = vld [vmem:[%s1] sm:$0x88]
        %v730 = vunpack.c.l.b16 %v728
        %v731 = vunpack.c.h.b16 %v728
        %v732 = vpack.c.b16 %v730, %v730
        %v733 = vpack.c.b16 %v731, %v731
        %v735 = vshrl.u32 %v732, 16
        %v736 = vpack.i.b16 %v735, %v735
        %v738 = vlaneseq
        %v739 = vshrl.u32 %v738, 7
        %v740 = vsub.s32 3, %v739
        %v741 = vrot.slane %v736, %v740
        %v743 = vshrl.u32 %v733, 16
        %v744 = vpack.i.b16 %v743, %v743
        %v746 = vlaneseq
        %v747 = vshrl.u32 %v746, 7
        %v748 = vsub.s32 3, %v747
        %v749 = vrot.slane %v744, %v748
        %v750 = vmul.bf16 %v726, %v741
        %v751 = vmul.bf16 %v727, %v749
        %v754 = vunpack.c.l.b16 %v750
        %v755 = vunpack.c.l.b16 %v751
        %v756 = vpack.c.b16 %v755, %v754
        %758 = vst [vmem:[#allocation2 + $0x38] sm:$0xff] %v756
        %759 = vrot.lane.b32.xlu0 %v472, 111
        %v760 = vpop.permute.xlu0 %759
        %761 = vrot.lane.b32.xlu0 %v473, 111
        %v762 = vpop.permute.xlu0 %761
        %vm763 = vcmp.lt.s32.totalorder %v481, 111
        %v764 = vsel %vm763, %v760, %v762
        %v765 = vsel %vm763, %v762, %v760
        %v766 = vpack.c.bf16 %v764, %v764
        %v767 = vpack.c.bf16 %v765, %v765
        %v768 = vld [vmem:[%s1 + $0x8] sm:$0x11]
        %v770 = vunpack.c.l.b16 %v768
        %v771 = vunpack.c.h.b16 %v768
        %v772 = vpack.c.b16 %v770, %v770
        %v773 = vpack.c.b16 %v771, %v771
        %v775 = vpack.i.b16 %v772, %v772
        %v777 = vlaneseq
        %v778 = vshrl.u32 %v777, 7
        %v779 = vsub.s32 0, %v778
        %v780 = vrot.slane %v775, %v779
        %v782 = vpack.i.b16 %v773, %v773
        %v784 = vlaneseq
        %v785 = vshrl.u32 %v784, 7
        %v786 = vsub.s32 0, %v785
        %v787 = vrot.slane %v782, %v786
        %v788 = vmul.bf16 %v766, %v780
        %v789 = vmul.bf16 %v767, %v787
        %v792 = vunpack.c.l.b16 %v788
        %v793 = vunpack.c.l.b16 %v789
        %v794 = vpack.c.b16 %v793, %v792
        %796 = vst [vmem:[#allocation2 + $0x40] sm:$0xff] %v794
        %v797 = vld [vmem:[%s5] sm:$0xf]
        %v798 = vld [vmem:[#allocation2] sm:$0xff]
        %v799 = vld [vmem:[#allocation2 + $0x8] sm:$0xff]
        %v800 = vld [vmem:[#allocation2 + $0x10] sm:$0xff]
        %v801 = vld [vmem:[#allocation2 + $0x18] sm:$0xff]
        %v802 = vld [vmem:[#allocation2 + $0x20] sm:$0xff]
        %v803 = vld [vmem:[#allocation2 + $0x28] sm:$0xff]
        %v804 = vld [vmem:[#allocation2 + $0x30] sm:$0xff]
        %v805 = vld [vmem:[#allocation2 + $0x38] sm:$0xff]
        %v806 = vld [vmem:[#allocation2 + $0x40] sm:$0xff]
        %v816 = vunpack.c.l.b16 %v798
        %v817 = vunpack.c.h.b16 %v798
        %v818 = vunpack.c.l.b16 %v799
        %v819 = vunpack.c.h.b16 %v799
        %v820 = vunpack.c.l.b16 %v800
        %v821 = vunpack.c.h.b16 %v800
        %v822 = vunpack.c.l.b16 %v801
        %v823 = vunpack.c.h.b16 %v801
        %v824 = vunpack.c.l.b16 %v802
        %v825 = vunpack.c.h.b16 %v802
        %v826 = vunpack.c.l.b16 %v803
        %v827 = vunpack.c.h.b16 %v803
        %v828 = vunpack.c.l.b16 %v804
        %v829 = vunpack.c.h.b16 %v804
        %v830 = vunpack.c.l.b16 %v805
        %v831 = vunpack.c.h.b16 %v805
        %v832 = vunpack.c.l.b16 %v806
        %v833 = vunpack.c.h.b16 %v806
        %v834 = vpack.c.b16 %v818, %v816
        %v835 = vpack.c.b16 %v819, %v817
        %v836 = vpack.c.b16 %v822, %v820
        %v837 = vpack.c.b16 %v823, %v821
        %v838 = vpack.c.b16 %v826, %v824
        %v839 = vpack.c.b16 %v827, %v825
        %v840 = vpack.c.b16 %v830, %v828
        %v841 = vpack.c.b16 %v831, %v829
        %v842 = vpack.c.b16 %v832, %v832
        %v843 = vpack.c.b16 %v833, %v833
        %vm852 = vcmask 588800
        %v854 = vsel %vm852, %v797, 0
        %vm856 = vcmask 1043456
        %v858 = vsel %vm856, %v842, 0
        %v861 = vsel %vm856, %v843, 0
        %863 = vmatprep.subr.bf16.mxu0 0
        %864 = vmatpush1.bf16.msra.mxu0 0
        %865 = vmatprep.subr.bf16.mxu0 0
        %866 = vmatpush1.bf16.msra.mxu0 0
        %867 = vmatprep.subr.bf16.mxu0 0
        %868 = vmatpush1.bf16.msra.mxu0 0
        %869 = vmatprep.subr.bf16.mxu0 %v861
        %870 = vmatpush1.bf16.msra.mxu0 %v858
        %871 = vmatprep.subr.bf16.mxu0 %v841
        %872 = vmatpush1.bf16.msra.mxu0 %v840
        %873 = vmatprep.subr.bf16.mxu0 %v839
        %874 = vmatpush1.bf16.msra.mxu0 %v838
        %875 = vmatprep.subr.bf16.mxu0 %v837
        %876 = vmatpush1.bf16.msra.mxu0 %v836
        %877 = vmatprep.subr.bf16.mxu0 %v835
        %878 = vmatpush1.bf16.msra.mxu0 %v834
        %879 = vmatprep.subr.bf16.mxu0 0
        %880 = vmatpush2.bf16.msra.mxu0 0
        %881 = vmatprep.subr.bf16.mxu0 0
        %882 = vmatpush2.bf16.msra.mxu0 0
        %883 = vmatprep.subr.bf16.mxu0 0
        %884 = vmatpush2.bf16.msra.mxu0 0
        %885 = vmatprep.subr.bf16.mxu0 0
        %886 = vmatpush2.bf16.msra.mxu0 0
        %887 = vmatprep.subr.bf16.mxu0 0
        %888 = vmatpush2.bf16.msra.mxu0 0
        %889 = vmatprep.subr.bf16.mxu0 0
        %890 = vmatpush2.bf16.msra.mxu0 0
        %891 = vmatprep.subr.bf16.mxu0 0
        %892 = vmatpush2.bf16.msra.mxu0 0
        %893 = vmatprep.subr.bf16.mxu0 0
        %894 = vmatpush2.bf16.msra.mxu0 0
        %895 = vmatprep.mubr.bf16.mxu0 0
        %896 = vmatmul.mubr.bf16.gmra.mxu0 %v854
        %v897 = vpop.f32.mrf.mxu0
        %v898 = vadd.f32 0.0, %v897
        %v899 = vpop.f32.mrf.mxu0
        %v900 = vadd.f32 0.0, %v899
        %v901 = vpop.f32.mrf.mxu0
        %v902 = vpop.f32.mrf.mxu0
        %903 = vdwg.mxu0
        %v904 = vld [vmem:[%s6] sm:$0xff]
        %906 = vset.pattern.permute.xlu0 0
        %907 = vperm.xlu0 %906, %v904
        %v908 = vpop.permute.xlu0 %907
        %v910 = vmul.f32 %v898, %v908
        %v911 = vmul.f32 %v900, %v908
        %v912 = vld [vmem:[%s7] sm:$0xff]
        %914 = vset.pattern.permute.xlu0 0
        %915 = vperm.xlu0 %914, %v912
        %v916 = vpop.permute.xlu0 %915
        %v918 = vadd.f32 %v910, %v916
        %v919 = vadd.f32 %v911, %v916
        %v920 = vmax.f32 %v918, 0.0
        %v921 = vmax.f32 %v919, 0.0
        %v922 = vld [vmem:[%s8] sm:$0xf]
        %v923 = vld [vmem:[%s8 + $0x4] sm:$0xf]
        %v924 = vld [vmem:[%s8 + $0x8] sm:$0xf]
        %v925 = vld [vmem:[%s8 + $0xc] sm:$0xf]
        %v926 = vpack.c.bf16 %v920, %v920
        %v927 = vpack.c.bf16 %v921, %v921
        %v932 = vunpack.c.l.b16 %v922
        %v933 = vunpack.c.l.b16 %v923
        %v934 = vunpack.c.l.b16 %v924
        %v935 = vunpack.c.l.b16 %v925
        %v936 = vpack.c.b16 %v933, %v932
        %v937 = vpack.c.b16 %v935, %v934
        %vm938 = vcmask 64512
        %v940 = vsel %vm938, %v936, 0
        %v943 = vsel %vm938, %v937, 0
        %v946 = vsel %vm856, %v926, 0
        %v949 = vsel %vm856, %v927, 0
        %951 = vmatprep.subr.bf16.mxu0 0
        %952 = vmatpush1.bf16.msra.mxu0 0
        %953 = vmatprep.subr.bf16.mxu0 0
        %954 = vmatpush1.bf16.msra.mxu0 0
        %955 = vmatprep.subr.bf16.mxu0 0
        %956 = vmatpush1.bf16.msra.mxu0 0
        %957 = vmatprep.subr.bf16.mxu0 0
        %958 = vmatpush1.bf16.msra.mxu0 0
        %959 = vmatprep.subr.bf16.mxu0 0
        %960 = vmatpush1.bf16.msra.mxu0 0
        %961 = vmatprep.subr.bf16.mxu0 0
        %962 = vmatpush1.bf16.msra.mxu0 0
        %963 = vmatprep.subr.bf16.mxu0 0
        %964 = vmatpush1.bf16.msra.mxu0 0
        %965 = vmatprep.subr.bf16.mxu0 %v949
        %966 = vmatpush1.bf16.msra.mxu0 %v946
        %967 = vmatprep.subr.bf16.mxu0 0
        %968 = vmatpush2.bf16.msra.mxu0 0
        %969 = vmatprep.subr.bf16.mxu0 0
        %970 = vmatpush2.bf16.msra.mxu0 0
        %971 = vmatprep.subr.bf16.mxu0 0
        %972 = vmatpush2.bf16.msra.mxu0 0
        %973 = vmatprep.subr.bf16.mxu0 0
        %974 = vmatpush2.bf16.msra.mxu0 0
        %975 = vmatprep.subr.bf16.mxu0 0
        %976 = vmatpush2.bf16.msra.mxu0 0
        %977 = vmatprep.subr.bf16.mxu0 0
        %978 = vmatpush2.bf16.msra.mxu0 0
        %979 = vmatprep.subr.bf16.mxu0 0
        %980 = vmatpush2.bf16.msra.mxu0 0
        %981 = vmatprep.subr.bf16.mxu0 0
        %982 = vmatpush2.bf16.msra.mxu0 0
        %983 = vmatprep.mubr.bf16.mxu0 0
        %984 = vmatmul.mubr.bf16.gmra.mxu0 %v940
        %v985 = vpop.f32.mrf.mxu0
        %v986 = vadd.f32 0.0, %v985
        %v987 = vpop.f32.mrf.mxu0
        %v988 = vadd.f32 0.0, %v987
        %v989 = vpop.f32.mrf.mxu0
        %v990 = vadd.f32 0.0, %v989
        %v991 = vpop.f32.mrf.mxu0
        %v992 = vadd.f32 0.0, %v991
        %993 = vmatprep.mubr.bf16.mxu0 0
        %994 = vmatmul.mubr.bf16.gmra.mxu0 %v943
        %v995 = vpop.f32.mrf.mxu0
        %v996 = vadd.f32 0.0, %v995
        %v997 = vpop.f32.mrf.mxu0
        %v998 = vadd.f32 0.0, %v997
        %v999 = vpop.f32.mrf.mxu0
        %v1000 = vadd.f32 0.0, %v999
        %v1001 = vpop.f32.mrf.mxu0
        %v1002 = vadd.f32 0.0, %v1001
        %1003 = vdwg.mxu0
        %v1004 = vld [vmem:[%s384] sm:$0xff]
        %v1005 = vld [vmem:[%s384 + $0x8] sm:$0xff]
        %v1006 = vld [vmem:[%s384 + $0x10] sm:$0xff]
        %v1007 = vld [vmem:[%s384 + $0x18] sm:$0xff]
        %v1008 = vunpack.c.l.bf16 %v1004
        %v1009 = vunpack.c.h.bf16 %v1004
        %v1010 = vunpack.c.l.bf16 %v1005
        %v1011 = vunpack.c.h.bf16 %v1005
        %v1012 = vunpack.c.l.bf16 %v1006
        %v1013 = vunpack.c.h.bf16 %v1006
        %v1014 = vunpack.c.l.bf16 %v1007
        %v1015 = vunpack.c.h.bf16 %v1007
        %v1016 = vld [vmem:[%s9] sm:$0xff]
        %v1017 = vld [vmem:[%s9 + $0x8] sm:$0xff]
        %v1018 = vld [vmem:[%s9 + $0x10] sm:$0xff]
        %v1019 = vld [vmem:[%s9 + $0x18] sm:$0xff]
        %1021 = vset.pattern.permute.xlu0 0
        %1022 = vperm.xlu0 %1021, %v1016
        %v1023 = vpop.permute.xlu0 %1022
        %1026 = vset.pattern.permute.xlu0 0
        %1027 = vperm.xlu0 %1026, %v1017
        %v1028 = vpop.permute.xlu0 %1027
        %1031 = vset.pattern.permute.xlu0 0
        %1032 = vperm.xlu0 %1031, %v1018
        %v1033 = vpop.permute.xlu0 %1032
        %1036 = vset.pattern.permute.xlu0 0
        %1037 = vperm.xlu0 %1036, %v1019
        %v1038 = vpop.permute.xlu0 %1037
        %v1040 = vmul.f32 %v986, %v1023
        %v1041 = vmul.f32 %v988, %v1023
        %v1042 = vmul.f32 %v990, %v1028
        %v1043 = vmul.f32 %v992, %v1028
        %v1044 = vmul.f32 %v996, %v1033
        %v1045 = vmul.f32 %v998, %v1033
        %v1046 = vmul.f32 %v1000, %v1038
        %v1047 = vmul.f32 %v1002, %v1038
        %v1048 = vld [vmem:[%s10] sm:$0xff]
        %v1049 = vld [vmem:[%s10 + $0x8] sm:$0xff]
        %v1050 = vld [vmem:[%s10 + $0x10] sm:$0xff]
        %v1051 = vld [vmem:[%s10 + $0x18] sm:$0xff]
        %1053 = vset.pattern.permute.xlu0 0
        %1054 = vperm.xlu0 %1053, %v1048
        %v1055 = vpop.permute.xlu0 %1054
        %1058 = vset.pattern.permute.xlu0 0
        %1059 = vperm.xlu0 %1058, %v1049
        %v1060 = vpop.permute.xlu0 %1059
        %1063 = vset.pattern.permute.xlu0 0
        %1064 = vperm.xlu0 %1063, %v1050
        %v1065 = vpop.permute.xlu0 %1064
        %1068 = vset.pattern.permute.xlu0 0
        %1069 = vperm.xlu0 %1068, %v1051
        %v1070 = vpop.permute.xlu0 %1069
        %v1072 = vadd.f32 %v1040, %v1055
        %v1073 = vadd.f32 %v1041, %v1055
        %v1074 = vadd.f32 %v1042, %v1060
        %v1075 = vadd.f32 %v1043, %v1060
        %v1076 = vadd.f32 %v1044, %v1065
        %v1077 = vadd.f32 %v1045, %v1065
        %v1078 = vadd.f32 %v1046, %v1070
        %v1079 = vadd.f32 %v1047, %v1070
        %v1080 = vadd.f32 %v1072, %v1008
        %v1081 = vadd.f32 %v1073, %v1009
        %v1082 = vadd.f32 %v1074, %v1010
        %v1083 = vadd.f32 %v1075, %v1011
        %v1084 = vadd.f32 %v1076, %v1012
        %v1085 = vadd.f32 %v1077, %v1013
        %v1086 = vadd.f32 %v1078, %v1014
        %v1087 = vadd.f32 %v1079, %v1015
        %v1088 = vmax.f32 %v1080, 0.0
        %v1089 = vmax.f32 %v1081, 0.0
        %v1090 = vmax.f32 %v1082, 0.0
        %v1091 = vmax.f32 %v1083, 0.0
        %v1092 = vmax.f32 %v1084, 0.0
        %v1093 = vmax.f32 %v1085, 0.0
        %v1094 = vmax.f32 %v1086, 0.0
        %v1095 = vmax.f32 %v1087, 0.0
        %1096 = vst [vmem:[%s379] sm:$0xff] %v1088
        %1097 = vst [vmem:[%s379 + $0x8] sm:$0xff] %v1089
        %1098 = vst [vmem:[%s379 + $0x10] sm:$0xff] %v1090
        %1099 = vst [vmem:[%s379 + $0x18] sm:$0xff] %v1091
        %1100 = vst [vmem:[%s379 + $0x20] sm:$0xff] %v1092
        %1101 = vst [vmem:[%s379 + $0x28] sm:$0xff] %v1093
        %1102 = vst [vmem:[%s379 + $0x30] sm:$0xff] %v1094
        %1103 = vst [vmem:[%s379 + $0x38] sm:$0xff] %v1095
        %s1104 = sand.u32 %s269, 1
        %s1105 = scalar_lea.sflag [#allocation4], %s1104
        %s1106 = sand.u32 %s269, 1
        %s1107 = smul.addr %s1106, 64
        %s1108 = scalar_lea.vmem [#allocation3], %s1107
        // Predicated region
        $region65: #{tpu_custom_call.1} parent=63 // pred_check
          %p1109 = pneg %p279
        $region66: #{tpu_custom_call.1} parent=63 // pred_check_branch
          %1111 = sbr.rel (%p1109) target = $region68
        $region67: #{tpu_custom_call.1} parent=63 // pred_region
          %s1113 = ssub.s32 1024, 1024
          %1114 = vsyncadd %s1105, %s1113
          %s1115 = smul.addr %s25, 8
          %s1116 = smul.addr %s1115, 128
          %s1117 = scalar_lea.hbm %s11, %s1116
          %s1118 = sshll.u32 %s1108, 4
          %s1119 = int_to_ptr.vmem [resolvable:$true] %s1118
          %1124 = dma.vmem_to_hbm [thread:$0]  %s1119, 1024, %s1117, %s1105, 256, 256, 16
        $region68: #{tpu_custom_call.1} parent=63 // pred_fallthru
          _
      $region64: #{tpu_custom_call.1} parent=5 // pred_fallthru
        _
      %p1125 = scmp.le.s32.totalorder 2, %s20
      // Predicated region
      $region69: #{tpu_custom_call.1} parent=5 // pred_check
        %p1126 = pneg %p1125
      $region70: #{tpu_custom_call.1} parent=5 // pred_check_branch
        %1128 = sbr.rel (%p1126) target = $region72
      $region71: #{tpu_custom_call.1} parent=5 // pred_region
        %s1129 = ssub.s32 %s20, 2
        // Predicated region
        $region73: #{tpu_custom_call.1} parent=71 // pred_check
          %p1130 = pneg %p285
        $region74: #{tpu_custom_call.1} parent=71 // pred_check_branch
          %1132 = sbr.rel (%p1130) target = $region76
        $region75: #{tpu_custom_call.1} parent=71 // pred_region
          %s1133 = sand.u32 %s270, 1
          %s1134 = scalar_lea.sflag [#allocation4], %s1133
          %s1135 = sand.u32 %s270, 1
          %s1136 = smul.addr %s1135, 64
          %s1137 = scalar_lea.vmem [#allocation3], %s1136
          %1138 = dma.done %s1134, 1024
        $region76: #{tpu_custom_call.1} parent=71 // pred_fallthru
          _
      $region72: #{tpu_custom_call.1} parent=5 // pred_fallthru
        _
    $region6: #{tpu_custom_call.1} parent=1 // loop_footer
      %s24 = sadd.s32 1, %s20
    $region7: #{tpu_custom_call.1} parent=1 // loop_footer_branch
      %19 = sbr.rel target = $region3
    $region8: #{tpu_custom_call.1} parent=1 // loop_exit
      _
    %1139 = vsyncpa [#allocation4], 1
    %s1140 = scalar_lea.sflag [#allocation4], 1
    %1141 = vsyncpa %s1140, 1

</llo_original>
